<compile_context>
chip_gen: v7x
topology: tpu7x:2x2x1
jax: 0.10.0
libtpu: 0.0.40
codegen_flags: <defaults>
</compile_context>

<pallas_src>
import functools

import jax
import jax.numpy as jnp
from jax.experimental import pallas as pl
from jax.experimental.pallas import tpu as pltpu


# ------------------------- kernels -------------------------

def _ce_specific_label_kernel(out_ref, psum_ref, *, label, batch_size, tile_b):
    """Partial sum over this batch tile of [logsumexp(x_i) - x_i[label]]."""
    i = pl.program_id(0)
    x = out_ref[...].astype(jnp.float32)                         # (TB, C)

    m = jnp.max(x, axis=1, keepdims=True)                        # (TB, 1)
    lse = jnp.log(jnp.sum(jnp.exp(x - m), axis=1, keepdims=True)) + m

    # Mask-based pick of the target logit (no materialized slice copy).
    col = jax.lax.broadcasted_iota(jnp.int32, x.shape, 1)
    tgt = jnp.sum(jnp.where(col == label, x, 0.0), axis=1, keepdims=True)

    per_row = lse - tgt                                          # (TB, 1)

    # Mask padded rows of the (possibly partial) last tile.
    row = jax.lax.broadcasted_iota(jnp.int32, per_row.shape, 0) + i * tile_b
    per_row = jnp.where(row < batch_size, per_row, 0.0)

    psum_ref[...] = jnp.full(psum_ref.shape, jnp.sum(per_row), jnp.float32)


def _neg_nll_kernel(out_ref, tgt_ref, psum_ref, *, batch_size, tile_b):
    """Partial sum over this batch tile of x[i, targets[i]]."""
    i = pl.program_id(0)
    x = out_ref[...].astype(jnp.float32)                         # (TB, C)
    t = tgt_ref[...]                                             # (TB, 1) int32

    col = jax.lax.broadcasted_iota(jnp.int32, x.shape, 1)
    picked = jnp.sum(jnp.where(col == t, x, 0.0), axis=1, keepdims=True)

    row = jax.lax.broadcasted_iota(jnp.int32, picked.shape, 0) + i * tile_b
    picked = jnp.where(row < batch_size, picked, 0.0)

    psum_ref[...] = jnp.full(psum_ref.shape, jnp.sum(picked), jnp.float32)


# ------------------------- wrapper -------------------------

def _pick_tile_b(batch_size, num_classes, itemsize):
    """Largest 8-aligned batch tile with <= ~8 MiB per (double-buffered) buffer."""
    target_bytes = 8 * 1024 * 1024
    tb = target_bytes // max(1, num_classes * itemsize)
    tb = max(8, min(int(tb), 1024))
    tb = (tb // 8) * 8
    b_pad = ((batch_size + 7) // 8) * 8
    return int(min(tb, b_pad))


class AdversarialLoss:
    def __init__(self, num_classes, specific_label=None, *, tile_b=None,
                 pallas_min_bytes=256 * 1024):
        self.num_classes = num_classes
        self.specific_label = specific_label
        self.tile_b = tile_b                    # optional manual tile override
        self.pallas_min_bytes = pallas_min_bytes

    # Plain-jnp fallback for tiny problems (pallas_call overhead dominates).
    def _small_path(self, outputs, targets):
        x = outputs.astype(jnp.float32)
        if self.specific_label is not None:
            lse = jax.scipy.special.logsumexp(x, axis=1)
            return jnp.mean(lse - x[:, int(self.specific_label)])
        return jnp.mean(jnp.take_along_axis(x, targets, axis=1))

    def __call__(self, outputs, targets):
        B, C = outputs.shape
        itemsize = jnp.dtype(outputs.dtype).itemsize

        # Normalize targets (matches the torch module's int handling).
        if self.specific_label is None:
            if isinstance(targets, int):
                targets = jnp.full((B,), targets, dtype=jnp.int32)
            targets = jnp.asarray(targets, dtype=jnp.int32).reshape(B, 1)
        else:
            targets = None  # unused in the CE-vs-constant-label branch

        if B * C * itemsize < self.pallas_min_bytes:
            return self._small_path(outputs, targets)

        tb = self.tile_b if self.tile_b is not None else _pick_tile_b(B, C, itemsize)
        tb = max(8, (int(tb) // 8) * 8)
        nb = pl.cdiv(B, tb)

        compiler_params = pltpu.CompilerParams(
            dimension_semantics=("parallel",),          # megacore-splittable
            vmem_limit_bytes=48 * 1024 * 1024,          # safe on v7x's 64 MiB
        )
        # One (8,128) f32 tile of partial sum per grid step; distinct output
        # blocks per step keep the batch axis truly parallel.
        out_shape = jax.ShapeDtypeStruct((nb, 8, 128), jnp.float32)
        out_specs = pl.BlockSpec((1, 8, 128), lambda i: (i, 0, 0))

        if self.specific_label is not None:
            kernel = functools.partial(
                _ce_specific_label_kernel,
                label=int(self.specific_label), batch_size=B, tile_b=tb)
            partials = pl.pallas_call(
                kernel,
                out_shape=out_shape,
                grid=(nb,),
                in_specs=[pl.BlockSpec((tb, C), lambda i: (i, 0))],
                out_specs=out_specs,
                compiler_params=compiler_params,
            )(outputs)                                   # native dtype in HBM
        else:
            kernel = functools.partial(
                _neg_nll_kernel, batch_size=B, tile_b=tb)
            partials = pl.pallas_call(
                kernel,
                out_shape=out_shape,
                grid=(nb,),
                in_specs=[pl.BlockSpec((tb, C), lambda i: (i, 0)),
                          pl.BlockSpec((tb, 1), lambda i: (i, 0))],
                out_specs=out_specs,
                compiler_params=compiler_params,
            )(outputs, targets)

        return jnp.sum(partials[:, 0, 0]) / jnp.float32(B)


# ------------------------- demo -------------------------

if __name__ == "__main__":
    key = jax.random.PRNGKey(0)
    k1, k2 = jax.random.split(key)

    B, C = 20, 128  # small; B deliberately not a multiple of the tile to test masking
    outputs = jax.random.normal(k1, (B, C), dtype=jnp.float32)
    targets = jax.random.randint(k2, (B,), 0, C, dtype=jnp.int32)

    # Force the Pallas path (pallas_min_bytes=0) and a multi-tile grid (tile_b=8).
    loss_ce = AdversarialLoss(C, specific_label=3, tile_b=8,
                              pallas_min_bytes=0)(outputs, targets)
    loss_nll = AdversarialLoss(C, specific_label=None, tile_b=8,
                               pallas_min_bytes=0)(outputs, targets)

    # bf16 passthrough (no wrapper upcast; cast happens in-kernel).
    outputs_bf16 = outputs.astype(jnp.bfloat16)
    loss_ce_bf16 = AdversarialLoss(C, specific_label=3, tile_b=8,
                                   pallas_min_bytes=0)(outputs_bf16, targets)

    jax.block_until_ready((loss_ce, loss_nll, loss_ce_bf16))

    # Reference checks in plain JAX.
    lse = jax.scipy.special.logsumexp(outputs, axis=1)
    ref_ce = jnp.mean(lse - outputs[:, 3])
    ref_nll = jnp.mean(outputs[jnp.arange(B), targets])
    x32 = outputs_bf16.astype(jnp.float32)
    ref_ce_bf16 = jnp.mean(jax.scipy.special.logsumexp(x32, axis=1) - x32[:, 3])

    assert jnp.allclose(loss_ce, ref_ce, atol=1e-4), (loss_ce, ref_ce)
    assert jnp.allclose(loss_nll, ref_nll, atol=1e-4), (loss_nll, ref_nll)
    assert jnp.allclose(loss_ce_bf16, ref_ce_bf16, atol=1e-3), (loss_ce_bf16, ref_ce_bf16)

    print("KERNEL_OK")
</pallas_src>

<mosaic_0001>
module attributes {stable_mosaic.version = 11 : i64} {
  func.func @_ce_specific_label_kernel(%arg0: i32, %arg1: memref<8x128xf32, #tpu.memory_space<vmem>>, %arg2: memref<1x8x128xf32, #tpu.memory_space<vmem>>) attributes {dimension_semantics = [#tpu.dimension_semantics<parallel>], iteration_bounds = array<i64: 3>, scalar_prefetch = 0 : i64, scratch_operands = 0 : i64, tpu.core_type = #tpu.core_type<tc>, window_params = [{transform_indices = @transform_0, window_bounds = array<i64: 8, 128>}, {transform_indices = @transform_1, window_bounds = array<i64: 1, 8, 128>}]} {
    %c0 = arith.constant 0 : index
    %c0_0 = arith.constant 0 : index
    %0 = vector.load %arg1[%c0, %c0_0] : memref<8x128xf32, #tpu.memory_space<vmem>>, vector<8x128xf32>
    %cst = arith.constant dense<0xFF800000> : vector<8xf32>
    %1 = vector.multi_reduction <maximumf>, %0, %cst [1] : vector<8x128xf32> to vector<8xf32>
    %2 = vector.shape_cast %1 : vector<8xf32> to vector<8x1xf32>
    %3 = vector.broadcast %2 : vector<8x1xf32> to vector<8x128xf32>
    %4 = arith.subf %0, %3 : vector<8x128xf32>
    %5 = math.exp %4 : vector<8x128xf32>
    %cst_1 = arith.constant dense<0.000000e+00> : vector<8xf32>
    %6 = vector.multi_reduction <add>, %5, %cst_1 [1] : vector<8x128xf32> to vector<8xf32>
    %7 = vector.shape_cast %6 : vector<8xf32> to vector<8x1xf32>
    %8 = math.log %7 : vector<8x1xf32>
    %9 = arith.addf %8, %2 : vector<8x1xf32>
    %10 = tpu.iota {dimensions = array<i32: 1>} : vector<8x128xi32>
    %c3_i32 = arith.constant 3 : i32
    %11 = vector.broadcast %c3_i32 : i32 to vector<8x128xi32>
    %12 = arith.cmpi eq, %10, %11 : vector<8x128xi32>
    %cst_2 = arith.constant 0.000000e+00 : f32
    %13 = vector.broadcast %cst_2 : f32 to vector<8x128xf32>
    %14 = arith.select %12, %0, %13 : vector<8x128xi1>, vector<8x128xf32>
    %cst_3 = arith.constant dense<0.000000e+00> : vector<8xf32>
    %15 = vector.multi_reduction <add>, %14, %cst_3 [1] : vector<8x128xf32> to vector<8xf32>
    %16 = vector.shape_cast %15 : vector<8xf32> to vector<8x1xf32>
    %17 = arith.subf %9, %16 : vector<8x1xf32>
    %18 = tpu.iota {dimensions = array<i32: 0>} : vector<8x1xi32>
    %c8_i32 = arith.constant 8 : i32
    %19 = arith.muli %arg0, %c8_i32 : i32
    %20 = vector.broadcast %19 : i32 to vector<8x1xi32>
    %21 = arith.addi %18, %20 : vector<8x1xi32>
    %c20_i32 = arith.constant 20 : i32
    %22 = vector.broadcast %c20_i32 : i32 to vector<8x1xi32>
    %23 = arith.cmpi slt, %21, %22 : vector<8x1xi32>
    %cst_4 = arith.constant 0.000000e+00 : f32
    %24 = vector.broadcast %cst_4 : f32 to vector<8x1xf32>
    %25 = arith.select %23, %17, %24 : vector<8x1xi1>, vector<8x1xf32>
    %26 = vector.shape_cast %25 : vector<8x1xf32> to vector<1x8x1xf32>
    %cst_5 = arith.constant dense<0.000000e+00> : vector<1xf32>
    %27 = vector.multi_reduction <add>, %26, %cst_5 [1, 2] : vector<1x8x1xf32> to vector<1xf32>
    %28 = vector.shape_cast %27 : vector<1xf32> to vector<1x1x1xf32>
    %29 = vector.extract %28[0, 0, 0] : f32 from vector<1x1x1xf32>
    %30 = vector.broadcast %29 : f32 to vector<1x8x128xf32>
    %c0_6 = arith.constant 0 : index
    %c0_7 = arith.constant 0 : index
    %c0_8 = arith.constant 0 : index
    %31 = vector.load %arg2[%c0_6, %c0_7, %c0_8] : memref<1x8x128xf32, #tpu.memory_space<vmem>>, vector<1x8x128xf32>
    tpu.vector_store %arg2[%c0_6, %c0_7, %c0_8], %30 {strides = array<i32>} : memref<1x8x128xf32, #tpu.memory_space<vmem>>, vector<1x8x128xf32>,
    return
  }
  func.func @transform_0(%arg0: i32) -> (i32, i32) {
    %c0_i32 = arith.constant 0 : i32
    %c0_i32_0 = arith.constant 0 : i32
    return %arg0, %c0_i32 : i32, i32
  }
  func.func @transform_1(%arg0: i32) -> (i32, i32, i32) {
    %c0_i32 = arith.constant 0 : i32
    %c0_i32_0 = arith.constant 0 : i32
    %c0_i32_1 = arith.constant 0 : i32
    return %arg0, %c0_i32, %c0_i32_0 : i32, i32, i32
  }
}

</mosaic_0001>

<llo_original>
// kernel: tpu_custom_call.1
$region0: #{tpu_custom_call.1}
  #allocation0 [shape = 'u32[]', space=smem, size = 0x4, offset = 0x4, fixed_abs, tag = 'smem constant byte address 0x4 - core index']
  #allocation1 [shape = 'u32[144,128]{1,0:T(1,128)}', space=vmem, size = 0x12000, scoped, tag = 'internal scratch']
  %s0 = inlined_call_operand.hbm [shape: f32[20,128], index: 0, kind: input, shape index: {}]
  %s1 = inlined_call_operand.hbm [shape: f32[3,8,128], index: 1, kind: output, shape index: {}]
  %s2 = sld [smem:[#allocation0]]
  $region41: #{tpu_custom_call.1} parent=0
    _
  %s4 = ssub.s32 1, %s2
  %s5 = scalar_select 0, %s4, %s2
  $region1: #{tpu_custom_call.1} parent=0
    #allocation2 [shape = 'u8[8192]{0}', space=vmem, size = 0x2000, scoped, tag = 'input window, operand 0']
    #allocation3 [shape = 's32[2]{0}', space=sflag, size = 0x8, scoped, tag = 'scoped memory for tpu_custom_call.1']
    #allocation4 [shape = 's32[2]{0}', space=sflag, size = 0x8, scoped, tag = 'scoped memory for tpu_custom_call.1']
    #allocation5 [shape = 'u8[8192]{0}', space=vmem, size = 0x2000, scoped, tag = 'output window, operand 0']
    %6 = vsyncpa [#allocation3], 0
    %s7 = scalar_lea.sflag [#allocation3], 1
    %8 = vsyncpa %s7, 0
    %9 = vsyncpa [#allocation4], 0
    %s10 = scalar_lea.sflag [#allocation4], 1
    %11 = vsyncpa %s10, 0
    loop: start=0, step=1, limit=5
    $region2: #{tpu_custom_call.1} parent=1 // loop_pre_header
      _
    $region3: #{tpu_custom_call.1} parent=1 // loop_header
      %s13 = sphi 0, %s17
      %p14 = scmp.ge.s32.totalorder %s13, 5
      %s23 = sphi 0, %s25
      %s26 = sphi 0, %s23
      %s27 = sphi 0, %s26
      %s43 = sphi 0, %s27
      %s49 = sphi 0, %s51
      %s52 = sphi 0, %s49
      %s53 = sphi 0, %s52
      %s69 = sphi 0, %s53
    $region4: #{tpu_custom_call.1} parent=1 // loop_header_branch
      %16 = sbr.rel (%p14) target = $region8
    $region5: #{tpu_custom_call.1} parent=1 // loop_body
      %s18 = ssub.s32 %s13, 1
      %s19 = ssub.s32 %s13, 2
      %s20 = sadd.s32 %s13, 1
      %s21 = ssub.s32 %s13, %s20
      %p22 = scmp.eq.s32.totalorder %s21, 0
      %s24 = sadd.s32 %s23, 1
      %s25 = scalar_select %p22, %s23, %s24
      %p28 = pneg %p22
      %p29 = scmp.eq.s32.totalorder %s13, 2
      %p30 = por %p28, %p29
      %p31 = scmp.ne.s32.totalorder %s23, %s26
      %p32 = scmp.eq.s32.totalorder %s13, 0
      %p33 = por %p31, %p32
      %p34 = scmp.ne.s32.totalorder %s23, %s26
      %p35 = scmp.eq.s32.totalorder %s18, 2
      %p36 = por %p34, %p35
      %p37 = scmp.ne.s32.totalorder %s26, %s27
      %p38 = scmp.eq.s32.totalorder %s18, 0
      %p39 = por %p37, %p38
      %p40 = scmp.ne.s32.totalorder %s26, %s27
      %p41 = scmp.eq.s32.totalorder %s19, 2
      %p42 = por %p40, %p41
      %p44 = scmp.ne.s32.totalorder %s27, %s43
      %p45 = scmp.eq.s32.totalorder %s19, 0
      %p46 = por %p44, %p45
      %s47 = ssub.s32 %s13, %s20
      %p48 = scmp.eq.s32.totalorder %s47, 0
      %s50 = sadd.s32 %s49, 1
      %s51 = scalar_select %p48, %s49, %s50
      %p54 = pneg %p48
      %p55 = scmp.eq.s32.totalorder %s13, 2
      %p56 = por %p54, %p55
      %p57 = scmp.ne.s32.totalorder %s49, %s52
      %p58 = scmp.eq.s32.totalorder %s13, 0
      %p59 = por %p57, %p58
      %p60 = scmp.ne.s32.totalorder %s49, %s52
      %p61 = scmp.eq.s32.totalorder %s18, 2
      %p62 = por %p60, %p61
      %p63 = scmp.ne.s32.totalorder %s52, %s53
      %p64 = scmp.eq.s32.totalorder %s18, 0
      %p65 = por %p63, %p64
      %p66 = scmp.ne.s32.totalorder %s52, %s53
      %p67 = scmp.eq.s32.totalorder %s19, 2
      %p68 = por %p66, %p67
      %p70 = scmp.ne.s32.totalorder %s53, %s69
      %p71 = scmp.eq.s32.totalorder %s19, 0
      %p72 = por %p70, %p71
      %p73 = scmp.le.s32.totalorder 1, %s13
      %p74 = scmp.lt.s32.totalorder %s13, 4
      %p75 = pnand %p73, %p74
      %p76 = pneg %p75
      // Predicated region
      $region9: #{tpu_custom_call.1} parent=5 // pred_check
        _
      $region10: #{tpu_custom_call.1} parent=5 // pred_check_branch
        %78 = sbr.rel (%p75) target = $region12
      $region11: #{tpu_custom_call.1} parent=5 // pred_region
        %s79 = ssub.s32 %s13, 1
      $region12: #{tpu_custom_call.1} parent=5 // pred_fallthru
        _
      %p80 = scmp.lt.s32.totalorder %s13, 3
      // Predicated region
      $region13: #{tpu_custom_call.1} parent=5 // pred_check
        %p81 = pneg %p80
      $region14: #{tpu_custom_call.1} parent=5 // pred_check_branch
        %83 = sbr.rel (%p81) target = $region16
      $region15: #{tpu_custom_call.1} parent=5 // pred_region
        // Predicated region
        $region17: #{tpu_custom_call.1} parent=15 // pred_check
          %p84 = pneg %p33
        $region18: #{tpu_custom_call.1} parent=15 // pred_check_branch
          %86 = sbr.rel (%p84) target = $region20
        $region19: #{tpu_custom_call.1} parent=15 // pred_region
          %s87 = sand.u32 %s23, 1
          %s88 = scalar_lea.sflag [#allocation3], %s87
          %s89 = sand.u32 %s23, 1
          %s90 = smul.addr %s89, 8
          %s91 = scalar_lea.vmem [#allocation2], %s90
          %s93 = ssub.s32 128, 128
          %94 = vsyncadd %s88, %s93
          %s95 = smul.addr %s13, 128
          %s96 = scalar_lea.hbm %s0, %s95
          %s98 = sshll.u32 %s91, 4
          %s99 = int_to_ptr.vmem [resolvable:$true] %s98
          %101 = dma.hbm_to_vmem [thread:$0]  %s96, 128, %s99, %s88
        $region20: #{tpu_custom_call.1} parent=15 // pred_fallthru
          _
      $region16: #{tpu_custom_call.1} parent=5 // pred_fallthru
        _
      %p102 = scmp.le.s32.totalorder 1, %s13
      %p103 = scmp.lt.s32.totalorder %s13, 4
      %p104 = pnand %p102, %p103
      %p105 = pneg %p104
      // Predicated region
      $region21: #{tpu_custom_call.1} parent=5 // pred_check
        _
      $region22: #{tpu_custom_call.1} parent=5 // pred_check_branch
        %107 = sbr.rel (%p104) target = $region24
      $region23: #{tpu_custom_call.1} parent=5 // pred_region
        %s108 = ssub.s32 %s13, 1
        %s109 = sand.u32 %s26, 1
        %s110 = scalar_lea.sflag [#allocation3], %s109
        %s111 = sand.u32 %s26, 1
        %s112 = smul.addr %s111, 8
        %s113 = scalar_lea.vmem [#allocation2], %s112
        // Predicated region
        $region25: #{tpu_custom_call.1} parent=23 // pred_check
          %p114 = pneg %p39
        $region26: #{tpu_custom_call.1} parent=23 // pred_check_branch
          %116 = sbr.rel (%p114) target = $region28
        $region27: #{tpu_custom_call.1} parent=23 // pred_region
          %117 = dma.done %s110, 128
        $region28: #{tpu_custom_call.1} parent=23 // pred_fallthru
          _
        %s118 = sand.u32 %s26, 1
        %s119 = scalar_lea.sflag [#allocation3], %s118
        %s120 = sand.u32 %s26, 1
        %s121 = smul.addr %s120, 8
        %s122 = scalar_lea.vmem [#allocation2], %s121
        %p123 = pneg %p39
        %p124 = pneg %p36
        %p125 = pneg %p65
        %p126 = pneg %p62
        %s127 = sand.u32 %s52, 1
        %s128 = scalar_lea.sflag [#allocation4], %s127
        %s129 = sand.u32 %s52, 1
        %s130 = smul.addr %s129, 8
        %s131 = scalar_lea.vmem [#allocation5], %s130
        %v132 = vld [vmem:[%s113] sm:$0xff]
        %133 = vmax.xlane.f32.xlu0 %v132
        %v134 = vpop.xlane.xlu0 %133
        %v135 = vsub.f32 %v132, %v134
        %v136 = vmul.f32 %v135, 1.442695
        %v137 = vpow.pop %v136
        %138 = vadd.xlane.f32.xlu0 %v137
        %v139 = vpop.xlane.xlu0 %138
        %v140 = vlog2.pop %v139
        %v141 = vmul.f32 %v140, 0.6931472
        %v142 = vadd.f32 %v141, %v134
        %v143 = vlaneseq
        %v144 = vand.u32 %v143, 127
        %vm145 = vcmp.eq.s32.totalorder %v144, 3
        %v146 = vsel %vm145, %v132, 0.0
        %147 = vadd.xlane.f32.xlu0 %v146
        %v148 = vpop.xlane.xlu0 %147
        %v149 = vsub.f32 %v142, %v148
        %v150 = vlaneseq
        %v151 = vshrl.u32 %v150, 7
        %s152 = smul.u32 %s18, 8
        %v153 = vstv %s152
        %v154 = vadd.s32 %v151, %v153
        %vm155 = vcmp.lt.s32.totalorder %v154, 20
        %v156 = vsel %vm155, %v149, 0.0
        %vm157 = vcmask 7168
        %v158 = vsel %vm157, %v156, 0.0
        %159 = vadd.xlane.f32.xlu0 %v158
        %v160 = vpop.xlane.xlu0 %159
        %v161 = vrot.slane %v160, 4
        %v162 = vadd.f32 %v160, %v161
        %v163 = vrot.slane %v162, 2
        %v164 = vadd.f32 %v162, %v163
        %v165 = vrot.slane %v164, 1
        %v166 = vadd.f32 %v164, %v165
        %s167 = vtos %v166
        %v168 = vstv %s167
        %169 = vst [vmem:[%s131] sm:$0xff] %v168
        %s170 = sand.u32 %s52, 1
        %s171 = scalar_lea.sflag [#allocation4], %s170
        %s172 = sand.u32 %s52, 1
        %s173 = smul.addr %s172, 8
        %s174 = scalar_lea.vmem [#allocation5], %s173
        // Predicated region
        $region29: #{tpu_custom_call.1} parent=23 // pred_check
          %p175 = pneg %p62
        $region30: #{tpu_custom_call.1} parent=23 // pred_check_branch
          %177 = sbr.rel (%p175) target = $region32
        $region31: #{tpu_custom_call.1} parent=23 // pred_region
          %s179 = ssub.s32 128, 128
          %180 = vsyncadd %s171, %s179
          %s181 = smul.addr %s18, 128
          %s182 = scalar_lea.hbm %s1, %s181
          %s184 = sshll.u32 %s174, 4
          %s185 = int_to_ptr.vmem [resolvable:$true] %s184
          %187 = dma.vmem_to_hbm [thread:$0]  %s185, 128, %s182, %s171
        $region32: #{tpu_custom_call.1} parent=23 // pred_fallthru
          _
      $region24: #{tpu_custom_call.1} parent=5 // pred_fallthru
        _
      %p188 = scmp.le.s32.totalorder 2, %s13
      // Predicated region
      $region33: #{tpu_custom_call.1} parent=5 // pred_check
        %p189 = pneg %p188
      $region34: #{tpu_custom_call.1} parent=5 // pred_check_branch
        %191 = sbr.rel (%p189) target = $region36
      $region35: #{tpu_custom_call.1} parent=5 // pred_region
        %s192 = ssub.s32 %s13, 2
        // Predicated region
        $region37: #{tpu_custom_call.1} parent=35 // pred_check
          %p193 = pneg %p68
        $region38: #{tpu_custom_call.1} parent=35 // pred_check_branch
          %195 = sbr.rel (%p193) target = $region40
        $region39: #{tpu_custom_call.1} parent=35 // pred_region
          %s196 = sand.u32 %s53, 1
          %s197 = scalar_lea.sflag [#allocation4], %s196
          %s198 = sand.u32 %s53, 1
          %s199 = smul.addr %s198, 8
          %s200 = scalar_lea.vmem [#allocation5], %s199
          %201 = dma.done %s197, 128
        $region40: #{tpu_custom_call.1} parent=35 // pred_fallthru
          _
      $region36: #{tpu_custom_call.1} parent=5 // pred_fallthru
        _
    $region6: #{tpu_custom_call.1} parent=1 // loop_footer
      %s17 = sadd.s32 1, %s13
    $region7: #{tpu_custom_call.1} parent=1 // loop_footer_branch
      %12 = sbr.rel target = $region3
    $region8: #{tpu_custom_call.1} parent=1 // loop_exit
      _
    %202 = vsyncpa [#allocation3], 1
    %s203 = scalar_lea.sflag [#allocation3], 1
    %204 = vsyncpa %s203, 1
    %205 = vsyncpa [#allocation4], 1
    %s206 = scalar_lea.sflag [#allocation4], 1
    %207 = vsyncpa %s206, 1

</llo_original>
